<compile_context>
chip_gen: v7x
topology: tpu7x:2x2x1
jax: 0.10.0
libtpu: 0.0.40
codegen_flags: <defaults>
</compile_context>

<pallas_src>
import jax
import jax.numpy as jnp
from jax.experimental import pallas as pl
from jax.experimental.pallas import tpu as pltpu

H = W = 16            # spatial size
KH = KW = 3           # conv kernel
C_IN = 4              # input channels
C_FEAT = 32           # backbone feature_dim
NUM_CLASSES = 10
BN_EPS = 1e-5
HW = H * W
K_IM2COL = KH * KW * C_IN   # 36


# ---------------------------------------------------------------------------
# Single fused kernel: conv-as-matmul + bias + ReLU + global average pool
#                      + BatchNorm1d (inference stats) + Linear (no bias).
# One grid step handles B_TILE images (B_TILE*H*W im2col rows).
# ---------------------------------------------------------------------------
def fused_baseline_kernel(patches_ref, wconv_ref, bconv_ref,
                          gamma_ref, beta_ref, mean_ref, var_ref, wcls_ref,
                          logits_ref, gfeat_ref, bnfeat_ref):
    # patches_ref: (B_TILE*HW, K_IM2COL)   im2col rows for B_TILE images
    # wconv_ref:   (K_IM2COL, C_FEAT)      conv weights flattened over taps
    # bconv/gamma/beta/mean/var: (1, C_FEAT)
    # wcls_ref:    (C_FEAT, NUM_CLASSES)
    # logits_ref:  (B_TILE, NUM_CLASSES)
    # gfeat_ref / bnfeat_ref: (B_TILE, C_FEAT)
    b_tile = gfeat_ref.shape[0]
    cfeat = wconv_ref.shape[-1]

    # Conv3x3 as ONE MXU matmul: (B*HW, 36) x (36, Cfeat)
    y = jnp.dot(patches_ref[...], wconv_ref[...],
                preferred_element_type=jnp.float32)
    y = jnp.maximum(y + bconv_ref[...], 0.0)                 # bias + ReLU

    # Global average pool: mean over the HW rows of each image.
    # (b_tile*HW, Cfeat) -> (b_tile, HW, Cfeat) is a tile-aligned leading split
    # (HW = 256 is a multiple of 8), so this is a layout no-op.
    feat = jnp.mean(y.reshape(b_tile, HW, cfeat), axis=1)    # (B_TILE, Cfeat)
    gfeat_ref[...] = feat.astype(gfeat_ref.dtype)

    # BNNeck: BatchNorm1d with running (inference) statistics.
    inv_std = jax.lax.rsqrt(var_ref[...] + BN_EPS)
    bn = (feat - mean_ref[...]) * (inv_std * gamma_ref[...]) + beta_ref[...]
    bnfeat_ref[...] = bn.astype(bnfeat_ref.dtype)

    # Classifier (Linear, no bias) -> logits.
    logits_ref[...] = jnp.dot(bn, wcls_ref[...],
                              preferred_element_type=jnp.float32
                              ).astype(logits_ref.dtype)


# ---------------------------------------------------------------------------
# Wrapper: layout plumbing (NCHW -> NHWC, pad=1, im2col) fused by XLA into the
# kernel's input pre-arrangement; one pallas_call for the whole forward pass.
# ---------------------------------------------------------------------------
def _im2col(x_nchw):
    """NCHW -> padded NHWC 3x3 patches, shape (N*H*W, KH*KW*Cin)."""
    n = x_nchw.shape[0]
    x = jnp.transpose(x_nchw, (0, 2, 3, 1))                      # NHWC
    xp = jnp.pad(x, ((0, 0), (1, 1), (1, 1), (0, 0)))            # pad=1
    taps = [xp[:, kh:kh + H, kw:kw + W, :]
            for kh in range(KH) for kw in range(KW)]
    patches = jnp.concatenate(taps, axis=-1)                     # (N, H, W, 36)
    return patches.reshape(n * HW, K_IM2COL)


def baseline_forward(x_nchw, params, targets=None, *, b_tile=None):
    # TODO(synk): `targets` feeds the loss path of the original head (training
    # mode); inference forward (logits / global_feat / bn_feat) is implemented.
    n = x_nchw.shape[0]
    if b_tile is None:
        b_tile = n if n <= 256 else 256        # whole batch per step when small
    assert n % b_tile == 0, "batch must be divisible by b_tile"

    patches = _im2col(x_nchw)
    # NOTE: conv_w here is HWIO; PyTorch nn.Conv2d checkpoints (OIHW) would need
    # a transpose to (KH, KW, Cin, Cout) before this reshape.
    wconv = params["conv_w"].reshape(K_IM2COL, C_FEAT)
    row = lambda p: p.reshape(1, C_FEAT)

    logits, global_feat, bn_feat = pl.pallas_call(
        fused_baseline_kernel,
        out_shape=(
            jax.ShapeDtypeStruct((n, NUM_CLASSES), jnp.float32),
            jax.ShapeDtypeStruct((n, C_FEAT), jnp.float32),
            jax.ShapeDtypeStruct((n, C_FEAT), jnp.float32),
        ),
        grid=(n // b_tile,),
        in_specs=[
            pl.BlockSpec((b_tile * HW, K_IM2COL), lambda i: (i, 0)),
            pl.BlockSpec((K_IM2COL, C_FEAT), lambda i: (0, 0)),
            pl.BlockSpec((1, C_FEAT), lambda i: (0, 0)),
            pl.BlockSpec((1, C_FEAT), lambda i: (0, 0)),
            pl.BlockSpec((1, C_FEAT), lambda i: (0, 0)),
            pl.BlockSpec((1, C_FEAT), lambda i: (0, 0)),
            pl.BlockSpec((1, C_FEAT), lambda i: (0, 0)),
            pl.BlockSpec((C_FEAT, NUM_CLASSES), lambda i: (0, 0)),
        ],
        out_specs=(
            pl.BlockSpec((b_tile, NUM_CLASSES), lambda i: (i, 0)),
            pl.BlockSpec((b_tile, C_FEAT), lambda i: (i, 0)),
            pl.BlockSpec((b_tile, C_FEAT), lambda i: (i, 0)),
        ),
        compiler_params=pltpu.CompilerParams(
            dimension_semantics=("parallel",)),
    )(
        patches, wconv, row(params["conv_b"]),
        row(params["bn_gamma"]), row(params["bn_beta"]),
        row(params["bn_mean"]), row(params["bn_var"]),
        params["cls_w"],
    )
    return logits, global_feat, bn_feat


def init_params():
    k = jax.random.PRNGKey(42)
    k_conv, k_cls = jax.random.split(k)
    return {
        "conv_w": 0.1 * jax.random.normal(k_conv, (KH, KW, C_IN, C_FEAT), jnp.float32),
        "conv_b": jnp.zeros((C_FEAT,), jnp.float32),
        "bn_gamma": jnp.ones((C_FEAT,), jnp.float32),
        "bn_beta": jnp.zeros((C_FEAT,), jnp.float32),
        "bn_mean": jnp.zeros((C_FEAT,), jnp.float32),
        "bn_var": jnp.ones((C_FEAT,), jnp.float32),
        "cls_w": 0.01 * jax.random.normal(k_cls, (C_FEAT, NUM_CLASSES), jnp.float32),
    }


def _reference_forward(x_nchw, params):
    """Plain-jnp reference (same math) for a correctness spot-check."""
    patches = _im2col(x_nchw)
    y = jnp.maximum(patches @ params["conv_w"].reshape(K_IM2COL, C_FEAT)
                    + params["conv_b"], 0.0)
    feat = jnp.mean(y.reshape(x_nchw.shape[0], HW, C_FEAT), axis=1)
    inv_std = jax.lax.rsqrt(params["bn_var"] + BN_EPS)
    bn = (feat - params["bn_mean"]) * inv_std * params["bn_gamma"] + params["bn_beta"]
    return bn @ params["cls_w"], feat, bn


if __name__ == "__main__":
    params = init_params()
    x = jax.random.normal(jax.random.PRNGKey(0), (2, C_IN, H, W), jnp.float32)  # NCHW

    logits, global_feat, bn_feat = jax.jit(baseline_forward)(x, params)
    jax.block_until_ready((logits, global_feat, bn_feat))

    assert logits.shape == (2, NUM_CLASSES)
    assert global_feat.shape == (2, C_FEAT)
    assert bn_feat.shape == (2, C_FEAT)

    ref_logits, ref_feat, ref_bn = _reference_forward(x, params)
    assert jnp.allclose(logits, ref_logits, atol=1e-3, rtol=1e-3)
    assert jnp.allclose(global_feat, ref_feat, atol=1e-3, rtol=1e-3)
    assert jnp.allclose(bn_feat, ref_bn, atol=1e-3, rtol=1e-3)

    print("KERNEL_OK")
</pallas_src>

<mosaic_0001>
module attributes {stable_mosaic.version = 11 : i64} {
  func.func @fused_baseline_kernel(%arg0: i32, %arg1: memref<512x36xf32, #tpu.memory_space<vmem>>, %arg2: memref<36x32xf32, #tpu.memory_space<vmem>>, %arg3: memref<1x32xf32, #tpu.memory_space<vmem>>, %arg4: memref<1x32xf32, #tpu.memory_space<vmem>>, %arg5: memref<1x32xf32, #tpu.memory_space<vmem>>, %arg6: memref<1x32xf32, #tpu.memory_space<vmem>>, %arg7: memref<1x32xf32, #tpu.memory_space<vmem>>, %arg8: memref<32x10xf32, #tpu.memory_space<vmem>>, %arg9: memref<2x10xf32, #tpu.memory_space<vmem>>, %arg10: memref<2x32xf32, #tpu.memory_space<vmem>>, %arg11: memref<2x32xf32, #tpu.memory_space<vmem>>) attributes {dimension_semantics = [#tpu.dimension_semantics<parallel>], iteration_bounds = array<i64: 1>, scalar_prefetch = 0 : i64, scratch_operands = 0 : i64, tpu.core_type = #tpu.core_type<tc>, window_params = [{transform_indices = @transform_0, window_bounds = array<i64: 512, 36>}, {pipeline_mode = #tpu.pipeline_mode<synchronous>, transform_indices = @transform_1, window_bounds = array<i64: 36, 32>}, {pipeline_mode = #tpu.pipeline_mode<synchronous>, transform_indices = @transform_2, window_bounds = array<i64: 1, 32>}, {pipeline_mode = #tpu.pipeline_mode<synchronous>, transform_indices = @transform_3, window_bounds = array<i64: 1, 32>}, {pipeline_mode = #tpu.pipeline_mode<synchronous>, transform_indices = @transform_4, window_bounds = array<i64: 1, 32>}, {pipeline_mode = #tpu.pipeline_mode<synchronous>, transform_indices = @transform_5, window_bounds = array<i64: 1, 32>}, {pipeline_mode = #tpu.pipeline_mode<synchronous>, transform_indices = @transform_6, window_bounds = array<i64: 1, 32>}, {pipeline_mode = #tpu.pipeline_mode<synchronous>, transform_indices = @transform_7, window_bounds = array<i64: 32, 10>}, {transform_indices = @transform_8, window_bounds = array<i64: 2, 10>}, {transform_indices = @transform_9, window_bounds = array<i64: 2, 32>}, {transform_indices = @transform_10, window_bounds = array<i64: 2, 32>}]} {
    %c0 = arith.constant 0 : index
    %c0_0 = arith.constant 0 : index
    %0 = vector.load %arg1[%c0, %c0_0] : memref<512x36xf32, #tpu.memory_space<vmem>>, vector<512x36xf32>
    %c0_1 = arith.constant 0 : index
    %c0_2 = arith.constant 0 : index
    %1 = vector.load %arg2[%c0_1, %c0_2] : memref<36x32xf32, #tpu.memory_space<vmem>>, vector<36x32xf32>
    %cst = arith.constant dense<0.000000e+00> : vector<512x32xf32>
    %2 = tpu.matmul %0, %1, %cst {dimension_numbers = #tpu.dot_dimension_numbers<[1], [0], [0], [1], [0, 0, 1, 1], [], []>} : vector<512x36xf32>, vector<36x32xf32>, vector<512x32xf32> -> vector<512x32xf32>
    %c0_3 = arith.constant 0 : index
    %c0_4 = arith.constant 0 : index
    %3 = vector.load %arg3[%c0_3, %c0_4] : memref<1x32xf32, #tpu.memory_space<vmem>>, vector<1x32xf32>
    %4 = vector.broadcast %3 : vector<1x32xf32> to vector<512x32xf32>
    %5 = arith.addf %2, %4 : vector<512x32xf32>
    %cst_5 = arith.constant 0.000000e+00 : f32
    %6 = vector.broadcast %cst_5 : f32 to vector<512x32xf32>
    %7 = arith.maximumf %5, %6 : vector<512x32xf32>
    %8 = vector.shape_cast %7 : vector<512x32xf32> to vector<2x256x32xf32>
    %cst_6 = arith.constant dense<0.000000e+00> : vector<2x32xf32>
    %9 = vector.multi_reduction <add>, %8, %cst_6 [1] : vector<2x256x32xf32> to vector<2x32xf32>
    %cst_7 = arith.constant 2.560000e+02 : f32
    %10 = vector.broadcast %cst_7 : f32 to vector<2x32xf32>
    %11 = arith.divf %9, %10 : vector<2x32xf32>
    %c0_8 = arith.constant 0 : index
    %c0_9 = arith.constant 0 : index
    %12 = vector.load %arg10[%c0_8, %c0_9] : memref<2x32xf32, #tpu.memory_space<vmem>>, vector<2x32xf32>
    tpu.vector_store %arg10[%c0_8, %c0_9], %11 {strides = array<i32>} : memref<2x32xf32, #tpu.memory_space<vmem>>, vector<2x32xf32>,
    %c0_10 = arith.constant 0 : index
    %c0_11 = arith.constant 0 : index
    %13 = vector.load %arg7[%c0_10, %c0_11] : memref<1x32xf32, #tpu.memory_space<vmem>>, vector<1x32xf32>
    %cst_12 = arith.constant 9.99999974E-6 : f32
    %14 = vector.broadcast %cst_12 : f32 to vector<1x32xf32>
    %15 = arith.addf %13, %14 : vector<1x32xf32>
    %16 = math.rsqrt %15 : vector<1x32xf32>
    %c0_13 = arith.constant 0 : index
    %c0_14 = arith.constant 0 : index
    %17 = vector.load %arg6[%c0_13, %c0_14] : memref<1x32xf32, #tpu.memory_space<vmem>>, vector<1x32xf32>
    %18 = vector.broadcast %17 : vector<1x32xf32> to vector<2x32xf32>
    %19 = arith.subf %11, %18 : vector<2x32xf32>
    %c0_15 = arith.constant 0 : index
    %c0_16 = arith.constant 0 : index
    %20 = vector.load %arg4[%c0_15, %c0_16] : memref<1x32xf32, #tpu.memory_space<vmem>>, vector<1x32xf32>
    %21 = arith.mulf %16, %20 : vector<1x32xf32>
    %22 = vector.broadcast %21 : vector<1x32xf32> to vector<2x32xf32>
    %23 = arith.mulf %19, %22 : vector<2x32xf32>
    %c0_17 = arith.constant 0 : index
    %c0_18 = arith.constant 0 : index
    %24 = vector.load %arg5[%c0_17, %c0_18] : memref<1x32xf32, #tpu.memory_space<vmem>>, vector<1x32xf32>
    %25 = vector.broadcast %24 : vector<1x32xf32> to vector<2x32xf32>
    %26 = arith.addf %23, %25 : vector<2x32xf32>
    %c0_19 = arith.constant 0 : index
    %c0_20 = arith.constant 0 : index
    %27 = vector.load %arg11[%c0_19, %c0_20] : memref<2x32xf32, #tpu.memory_space<vmem>>, vector<2x32xf32>
    tpu.vector_store %arg11[%c0_19, %c0_20], %26 {strides = array<i32>} : memref<2x32xf32, #tpu.memory_space<vmem>>, vector<2x32xf32>,
    %c0_21 = arith.constant 0 : index
    %c0_22 = arith.constant 0 : index
    %28 = vector.load %arg8[%c0_21, %c0_22] : memref<32x10xf32, #tpu.memory_space<vmem>>, vector<32x10xf32>
    %cst_23 = arith.constant dense<0.000000e+00> : vector<2x10xf32>
    %29 = tpu.matmul %26, %28, %cst_23 {dimension_numbers = #tpu.dot_dimension_numbers<[1], [0], [0], [1], [0, 0, 1, 1], [], []>} : vector<2x32xf32>, vector<32x10xf32>, vector<2x10xf32> -> vector<2x10xf32>
    %c0_24 = arith.constant 0 : index
    %c0_25 = arith.constant 0 : index
    %30 = vector.load %arg9[%c0_24, %c0_25] : memref<2x10xf32, #tpu.memory_space<vmem>>, vector<2x10xf32>
    tpu.vector_store %arg9[%c0_24, %c0_25], %29 {strides = array<i32>} : memref<2x10xf32, #tpu.memory_space<vmem>>, vector<2x10xf32>,
    return
  }
  func.func @transform_0(%arg0: i32) -> (i32, i32) {
    %c0_i32 = arith.constant 0 : i32
    %c0_i32_0 = arith.constant 0 : i32
    return %arg0, %c0_i32 : i32, i32
  }
  func.func @transform_1(%arg0: i32) -> (i32, i32) {
    %c0_i32 = arith.constant 0 : i32
    %c0_i32_0 = arith.constant 0 : i32
    %c0_i32_1 = arith.constant 0 : i32
    return %c0_i32, %c0_i32_0 : i32, i32
  }
  func.func @transform_2(%arg0: i32) -> (i32, i32) {
    %c0_i32 = arith.constant 0 : i32
    %c0_i32_0 = arith.constant 0 : i32
    %c0_i32_1 = arith.constant 0 : i32
    return %c0_i32, %c0_i32_0 : i32, i32
  }
  func.func @transform_3(%arg0: i32) -> (i32, i32) {
    %c0_i32 = arith.constant 0 : i32
    %c0_i32_0 = arith.constant 0 : i32
    %c0_i32_1 = arith.constant 0 : i32
    return %c0_i32, %c0_i32_0 : i32, i32
  }
  func.func @transform_4(%arg0: i32) -> (i32, i32) {
    %c0_i32 = arith.constant 0 : i32
    %c0_i32_0 = arith.constant 0 : i32
    %c0_i32_1 = arith.constant 0 : i32
    return %c0_i32, %c0_i32_0 : i32, i32
  }
  func.func @transform_5(%arg0: i32) -> (i32, i32) {
    %c0_i32 = arith.constant 0 : i32
    %c0_i32_0 = arith.constant 0 : i32
    %c0_i32_1 = arith.constant 0 : i32
    return %c0_i32, %c0_i32_0 : i32, i32
  }
  func.func @transform_6(%arg0: i32) -> (i32, i32) {
    %c0_i32 = arith.constant 0 : i32
    %c0_i32_0 = arith.constant 0 : i32
    %c0_i32_1 = arith.constant 0 : i32
    return %c0_i32, %c0_i32_0 : i32, i32
  }
  func.func @transform_7(%arg0: i32) -> (i32, i32) {
    %c0_i32 = arith.constant 0 : i32
    %c0_i32_0 = arith.constant 0 : i32
    %c0_i32_1 = arith.constant 0 : i32
    return %c0_i32, %c0_i32_0 : i32, i32
  }
  func.func @transform_8(%arg0: i32) -> (i32, i32) {
    %c0_i32 = arith.constant 0 : i32
    %c0_i32_0 = arith.constant 0 : i32
    return %arg0, %c0_i32 : i32, i32
  }
  func.func @transform_9(%arg0: i32) -> (i32, i32) {
    %c0_i32 = arith.constant 0 : i32
    %c0_i32_0 = arith.constant 0 : i32
    return %arg0, %c0_i32 : i32, i32
  }
  func.func @transform_10(%arg0: i32) -> (i32, i32) {
    %c0_i32 = arith.constant 0 : i32
    %c0_i32_0 = arith.constant 0 : i32
    return %arg0, %c0_i32 : i32, i32
  }
}

</mosaic_0001>

<llo_original>
// kernel: baseline_forward.1
$region0: #{baseline_forward.1}
  #allocation0 [shape = 'u32[]', space=smem, size = 0x4, offset = 0x4, fixed_abs, tag = 'smem constant byte address 0x4 - core index']
  #allocation1 [shape = 'u32[144,128]{1,0:T(1,128)}', space=vmem, size = 0x12000, scoped, tag = 'internal scratch']
  %s0 = inlined_call_operand.vmem [shape: f32[512,36], index: 0, kind: input, shape index: {}]
  %s1 = inlined_call_operand.vmem [shape: f32[36,32], index: 1, kind: input, shape index: {}]
  %s2 = inlined_call_operand.vmem [shape: f32[1,32], index: 2, kind: input, shape index: {}]
  %s3 = inlined_call_operand.vmem [shape: f32[1,32], index: 3, kind: input, shape index: {}]
  %s4 = inlined_call_operand.vmem [shape: f32[1,32], index: 4, kind: input, shape index: {}]
  %s5 = inlined_call_operand.vmem [shape: f32[1,32], index: 5, kind: input, shape index: {}]
  %s6 = inlined_call_operand.vmem [shape: f32[1,32], index: 6, kind: input, shape index: {}]
  %s7 = inlined_call_operand.vmem [shape: f32[32,10], index: 7, kind: input, shape index: {}]
  %s8 = inlined_call_operand.hbm [shape: f32[2,10], index: 8, kind: output, shape index: {0}]
  %s9 = inlined_call_operand.hbm [shape: f32[2,32], index: 9, kind: output, shape index: {1}]
  %s10 = inlined_call_operand.hbm [shape: f32[2,32], index: 10, kind: output, shape index: {2}]
  %11 = xla_tuple %s8, %s9, %s10
  %s12 = sld [smem:[#allocation0]]
  $region58: #{baseline_forward.1} parent=0
    _
  %s14 = ssub.s32 1, %s12
  %s15 = scalar_select 0, %s14, %s12
  $region1: #{baseline_forward.1} parent=0
    #allocation2 [shape = 'u8[1024]{0}', space=vmem, size = 0x400, scoped, tag = 'output window, operand 0, single buffered']
    #allocation3 [shape = 's32[1]{0}', space=sflag, size = 0x4, scoped, tag = 'scoped memory for baseline_forward.1']
    #allocation4 [shape = 'u8[1024]{0}', space=vmem, size = 0x400, scoped, tag = 'output window, operand 1, single buffered']
    #allocation5 [shape = 's32[1]{0}', space=sflag, size = 0x4, scoped, tag = 'scoped memory for baseline_forward.1']
    #allocation6 [shape = 'u8[1024]{0}', space=vmem, size = 0x400, scoped, tag = 'output window, operand 2, single buffered']
    %16 = vsyncpa [#allocation3], 0
    %17 = vsyncpa [#allocation5], 0
    // Predicated region
    $region2: #{baseline_forward.1} parent=1 // pred_check
      _
    $region3: #{baseline_forward.1} parent=1 // pred_check_branch
      %19 = sbr.rel (0) target = $region5
    $region4: #{baseline_forward.1} parent=1 // pred_region
      _
    $region5: #{baseline_forward.1} parent=1 // pred_fallthru
      _
    // Predicated region
    $region6: #{baseline_forward.1} parent=1 // pred_check
      _
    $region7: #{baseline_forward.1} parent=1 // pred_check_branch
      %21 = sbr.rel (0) target = $region9
    $region8: #{baseline_forward.1} parent=1 // pred_region
      _
    $region9: #{baseline_forward.1} parent=1 // pred_fallthru
      _
    // Predicated region
    $region10: #{baseline_forward.1} parent=1 // pred_check
      _
    $region11: #{baseline_forward.1} parent=1 // pred_check_branch
      %23 = sbr.rel (0) target = $region13
    $region12: #{baseline_forward.1} parent=1 // pred_region
      _
    $region13: #{baseline_forward.1} parent=1 // pred_fallthru
      _
    // Predicated region
    $region14: #{baseline_forward.1} parent=1 // pred_check
      _
    $region15: #{baseline_forward.1} parent=1 // pred_check_branch
      %25 = sbr.rel (0) target = $region17
    $region16: #{baseline_forward.1} parent=1 // pred_region
      _
    $region17: #{baseline_forward.1} parent=1 // pred_fallthru
      _
    // Predicated region
    $region18: #{baseline_forward.1} parent=1 // pred_check
      _
    $region19: #{baseline_forward.1} parent=1 // pred_check_branch
      %27 = sbr.rel (0) target = $region21
    $region20: #{baseline_forward.1} parent=1 // pred_region
      _
    $region21: #{baseline_forward.1} parent=1 // pred_fallthru
      _
    // Predicated region
    $region22: #{baseline_forward.1} parent=1 // pred_check
      _
    $region23: #{baseline_forward.1} parent=1 // pred_check_branch
      %29 = sbr.rel (0) target = $region25
    $region24: #{baseline_forward.1} parent=1 // pred_region
      _
    $region25: #{baseline_forward.1} parent=1 // pred_fallthru
      _
    // Predicated region
    $region26: #{baseline_forward.1} parent=1 // pred_check
      _
    $region27: #{baseline_forward.1} parent=1 // pred_check_branch
      %31 = sbr.rel (0) target = $region29
    $region28: #{baseline_forward.1} parent=1 // pred_region
      _
    $region29: #{baseline_forward.1} parent=1 // pred_fallthru
      _
    // Predicated region
    $region30: #{baseline_forward.1} parent=1 // pred_check
      _
    $region31: #{baseline_forward.1} parent=1 // pred_check_branch
      %33 = sbr.rel (0) target = $region33
    $region32: #{baseline_forward.1} parent=1 // pred_region
      _
    $region33: #{baseline_forward.1} parent=1 // pred_fallthru
      _
    %v34 = vld [vmem:[%s0] sm:$0xff]
    %v35 = vld [vmem:[%s0 + $0x8] sm:$0xff]
    %v36 = vld [vmem:[%s0 + $0x10] sm:$0xff]
    %v37 = vld [vmem:[%s0 + $0x18] sm:$0xff]
    %v38 = vld [vmem:[%s0 + $0x20] sm:$0xff]
    %v39 = vld [vmem:[%s0 + $0x28] sm:$0xff]
    %v40 = vld [vmem:[%s0 + $0x30] sm:$0xff]
    %v41 = vld [vmem:[%s0 + $0x38] sm:$0xff]
    %v42 = vld [vmem:[%s0 + $0x40] sm:$0xff]
    %v43 = vld [vmem:[%s0 + $0x48] sm:$0xff]
    %v44 = vld [vmem:[%s0 + $0x50] sm:$0xff]
    %v45 = vld [vmem:[%s0 + $0x58] sm:$0xff]
    %v46 = vld [vmem:[%s0 + $0x60] sm:$0xff]
    %v47 = vld [vmem:[%s0 + $0x68] sm:$0xff]
    %v48 = vld [vmem:[%s0 + $0x70] sm:$0xff]
    %v49 = vld [vmem:[%s0 + $0x78] sm:$0xff]
    %v50 = vld [vmem:[%s0 + $0x80] sm:$0xff]
    %v51 = vld [vmem:[%s0 + $0x88] sm:$0xff]
    %v52 = vld [vmem:[%s0 + $0x90] sm:$0xff]
    %v53 = vld [vmem:[%s0 + $0x98] sm:$0xff]
    %v54 = vld [vmem:[%s0 + $0xa0] sm:$0xff]
    %v55 = vld [vmem:[%s0 + $0xa8] sm:$0xff]
    %v56 = vld [vmem:[%s0 + $0xb0] sm:$0xff]
    %v57 = vld [vmem:[%s0 + $0xb8] sm:$0xff]
    %v58 = vld [vmem:[%s0 + $0xc0] sm:$0xff]
    %v59 = vld [vmem:[%s0 + $0xc8] sm:$0xff]
    %v60 = vld [vmem:[%s0 + $0xd0] sm:$0xff]
    %v61 = vld [vmem:[%s0 + $0xd8] sm:$0xff]
    %v62 = vld [vmem:[%s0 + $0xe0] sm:$0xff]
    %v63 = vld [vmem:[%s0 + $0xe8] sm:$0xff]
    %v64 = vld [vmem:[%s0 + $0xf0] sm:$0xff]
    %v65 = vld [vmem:[%s0 + $0xf8] sm:$0xff]
    %v66 = vld [vmem:[%s0 + $0x100] sm:$0xff]
    %v67 = vld [vmem:[%s0 + $0x108] sm:$0xff]
    %v68 = vld [vmem:[%s0 + $0x110] sm:$0xff]
    %v69 = vld [vmem:[%s0 + $0x118] sm:$0xff]
    %v70 = vld [vmem:[%s0 + $0x120] sm:$0xff]
    %v71 = vld [vmem:[%s0 + $0x128] sm:$0xff]
    %v72 = vld [vmem:[%s0 + $0x130] sm:$0xff]
    %v73 = vld [vmem:[%s0 + $0x138] sm:$0xff]
    %v74 = vld [vmem:[%s0 + $0x140] sm:$0xff]
    %v75 = vld [vmem:[%s0 + $0x148] sm:$0xff]
    %v76 = vld [vmem:[%s0 + $0x150] sm:$0xff]
    %v77 = vld [vmem:[%s0 + $0x158] sm:$0xff]
    %v78 = vld [vmem:[%s0 + $0x160] sm:$0xff]
    %v79 = vld [vmem:[%s0 + $0x168] sm:$0xff]
    %v80 = vld [vmem:[%s0 + $0x170] sm:$0xff]
    %v81 = vld [vmem:[%s0 + $0x178] sm:$0xff]
    %v82 = vld [vmem:[%s0 + $0x180] sm:$0xff]
    %v83 = vld [vmem:[%s0 + $0x188] sm:$0xff]
    %v84 = vld [vmem:[%s0 + $0x190] sm:$0xff]
    %v85 = vld [vmem:[%s0 + $0x198] sm:$0xff]
    %v86 = vld [vmem:[%s0 + $0x1a0] sm:$0xff]
    %v87 = vld [vmem:[%s0 + $0x1a8] sm:$0xff]
    %v88 = vld [vmem:[%s0 + $0x1b0] sm:$0xff]
    %v89 = vld [vmem:[%s0 + $0x1b8] sm:$0xff]
    %v90 = vld [vmem:[%s0 + $0x1c0] sm:$0xff]
    %v91 = vld [vmem:[%s0 + $0x1c8] sm:$0xff]
    %v92 = vld [vmem:[%s0 + $0x1d0] sm:$0xff]
    %v93 = vld [vmem:[%s0 + $0x1d8] sm:$0xff]
    %v94 = vld [vmem:[%s0 + $0x1e0] sm:$0xff]
    %v95 = vld [vmem:[%s0 + $0x1e8] sm:$0xff]
    %v96 = vld [vmem:[%s0 + $0x1f0] sm:$0xff]
    %v97 = vld [vmem:[%s0 + $0x1f8] sm:$0xff]
    %v98 = vld [vmem:[%s1] sm:$0xff]
    %v99 = vld [vmem:[%s1 + $0x8] sm:$0xff]
    %v100 = vld [vmem:[%s1 + $0x10] sm:$0xff]
    %v101 = vld [vmem:[%s1 + $0x18] sm:$0xff]
    %v102 = vld [vmem:[%s1 + $0x20] sm:$0xf]
    %v103 = vld [vmem:[%s2] sm:$0x1]
    %v105 = vlaneseq
    %v106 = vshrl.u32 %v105, 7
    %v107 = vsub.s32 0, %v106
    %v108 = vrot.slane %v103, %v107
    %vm110 = vcmask 293888
    %v112 = vsel %vm110, %v34, 0
    %v115 = vsel %vm110, %v35, 0
    %v118 = vsel %vm110, %v36, 0
    %v121 = vsel %vm110, %v37, 0
    %v124 = vsel %vm110, %v38, 0
    %v127 = vsel %vm110, %v39, 0
    %v130 = vsel %vm110, %v40, 0
    %v133 = vsel %vm110, %v41, 0
    %v136 = vsel %vm110, %v42, 0
    %v139 = vsel %vm110, %v43, 0
    %v142 = vsel %vm110, %v44, 0
    %v145 = vsel %vm110, %v45, 0
    %v148 = vsel %vm110, %v46, 0
    %v151 = vsel %vm110, %v47, 0
    %v154 = vsel %vm110, %v48, 0
    %v157 = vsel %vm110, %v49, 0
    %v160 = vsel %vm110, %v50, 0
    %v163 = vsel %vm110, %v51, 0
    %v166 = vsel %vm110, %v52, 0
    %v169 = vsel %vm110, %v53, 0
    %v172 = vsel %vm110, %v54, 0
    %v175 = vsel %vm110, %v55, 0
    %v178 = vsel %vm110, %v56, 0
    %v181 = vsel %vm110, %v57, 0
    %v184 = vsel %vm110, %v58, 0
    %v187 = vsel %vm110, %v59, 0
    %v190 = vsel %vm110, %v60, 0
    %v193 = vsel %vm110, %v61, 0
    %v196 = vsel %vm110, %v62, 0
    %v199 = vsel %vm110, %v63, 0
    %v202 = vsel %vm110, %v64, 0
    %v205 = vsel %vm110, %v65, 0
    %v208 = vsel %vm110, %v66, 0
    %v211 = vsel %vm110, %v67, 0
    %v214 = vsel %vm110, %v68, 0
    %v217 = vsel %vm110, %v69, 0
    %v220 = vsel %vm110, %v70, 0
    %v223 = vsel %vm110, %v71, 0
    %v226 = vsel %vm110, %v72, 0
    %v229 = vsel %vm110, %v73, 0
    %v232 = vsel %vm110, %v74, 0
    %v235 = vsel %vm110, %v75, 0
    %v238 = vsel %vm110, %v76, 0
    %v241 = vsel %vm110, %v77, 0
    %v244 = vsel %vm110, %v78, 0
    %v247 = vsel %vm110, %v79, 0
    %v250 = vsel %vm110, %v80, 0
    %v253 = vsel %vm110, %v81, 0
    %v256 = vsel %vm110, %v82, 0
    %v259 = vsel %vm110, %v83, 0
    %v262 = vsel %vm110, %v84, 0
    %v265 = vsel %vm110, %v85, 0
    %v268 = vsel %vm110, %v86, 0
    %v271 = vsel %vm110, %v87, 0
    %v274 = vsel %vm110, %v88, 0
    %v277 = vsel %vm110, %v89, 0
    %v280 = vsel %vm110, %v90, 0
    %v283 = vsel %vm110, %v91, 0
    %v286 = vsel %vm110, %v92, 0
    %v289 = vsel %vm110, %v93, 0
    %v292 = vsel %vm110, %v94, 0
    %v295 = vsel %vm110, %v95, 0
    %v298 = vsel %vm110, %v96, 0
    %v301 = vsel %vm110, %v97, 0
    %vm303 = vcmask 1043456
    %v305 = vsel %vm303, %v102, 0
    %307 = vmatprep.subr.mxu0 0.0
    %308 = vmatpush1.msra.mxu0 %v98
    %309 = vmatprep.subr.mxu0 0.0
    %310 = vmatpush1.msra.mxu0 %v99
    %311 = vmatprep.subr.mxu0 0.0
    %312 = vmatpush1.msra.mxu0 %v100
    %313 = vmatprep.subr.mxu0 0.0
    %314 = vmatpush1.msra.mxu0 %v101
    %315 = vmatprep.subr.mxu0 0.0
    %316 = vmatpush1.msra.mxu0 %v305
    %317 = vmatprep.subr.mxu0 0.0
    %318 = vmatpush1.msra.mxu0 0.0
    %319 = vmatprep.subr.mxu0 0.0
    %320 = vmatpush1.msra.mxu0 0.0
    %321 = vmatprep.subr.mxu0 0.0
    %322 = vmatpush1.msra.mxu0 0.0
    %323 = vmatprep.subr.mxu0 0.0
    %324 = vmatpush1.msra.mxu0 0.0
    %325 = vmatprep.subr.mxu0 0.0
    %326 = vmatpush1.msra.mxu0 0.0
    %327 = vmatprep.subr.mxu0 0.0
    %328 = vmatpush1.msra.mxu0 0.0
    %329 = vmatprep.subr.mxu0 0.0
    %330 = vmatpush1.msra.mxu0 0.0
    %331 = vmatprep.subr.mxu0 0.0
    %332 = vmatpush1.msra.mxu0 0.0
    %333 = vmatprep.subr.mxu0 0.0
    %334 = vmatpush1.msra.mxu0 0.0
    %335 = vmatprep.subr.mxu0 0.0
    %336 = vmatpush1.msra.mxu0 0.0
    %337 = vmatprep.subr.mxu0 0.0
    %338 = vmatpush1.msra.mxu0 0.0
    %339 = vmatprep.subr.mxu0 0.0
    %340 = vmatpush1.msra.mxu0 0.0
    %341 = vmatprep.subr.mxu0 0.0
    %342 = vmatpush1.msra.mxu0 0.0
    %343 = vmatprep.subr.mxu0 0.0
    %344 = vmatpush1.msra.mxu0 0.0
    %345 = vmatprep.subr.mxu0 0.0
    %346 = vmatpush1.msra.mxu0 0.0
    %347 = vmatprep.subr.mxu0 0.0
    %348 = vmatpush1.msra.mxu0 0.0
    %349 = vmatprep.subr.mxu0 0.0
    %350 = vmatpush1.msra.mxu0 0.0
    %351 = vmatprep.subr.mxu0 0.0
    %352 = vmatpush1.msra.mxu0 0.0
    %353 = vmatprep.subr.mxu0 0.0
    %354 = vmatpush1.msra.mxu0 0.0
    %355 = vmatprep.subr.mxu0 0.0
    %356 = vmatpush1.msra.mxu0 0.0
    %357 = vmatprep.subr.mxu0 0.0
    %358 = vmatpush1.msra.mxu0 0.0
    %359 = vmatprep.subr.mxu0 0.0
    %360 = vmatpush1.msra.mxu0 0.0
    %361 = vmatprep.subr.mxu0 0.0
    %362 = vmatpush1.msra.mxu0 0.0
    %363 = vmatprep.subr.mxu0 0.0
    %364 = vmatpush1.msra.mxu0 0.0
    %365 = vmatprep.subr.mxu0 0.0
    %366 = vmatpush1.msra.mxu0 0.0
    %367 = vmatprep.subr.mxu0 0.0
    %368 = vmatpush1.msra.mxu0 0.0
    %369 = vmatprep.subr.mxu0 0.0
    %370 = vmatpush1.msra.mxu0 0.0
    %371 = vmatprep.mubr.f32.mxu0 0.0
    %372 = vmatmul.mubr.f32.gmra.mrb[0].mxu0 %v112
    %v373 = vpop.f32.mrb[0].mxu0
    %v374 = vadd.f32 %v108, %v373
    %v375 = vpop.f32.mrb[0].mxu0
    %376 = vmatprep.mubr.f32.mxu0 0.0
    %377 = vmatmul.mubr.f32.gmra.mrb[0].mxu0 %v115
    %v378 = vpop.f32.mrb[0].mxu0
    %v379 = vadd.f32 %v108, %v378
    %v380 = vpop.f32.mrb[0].mxu0
    %381 = vmatprep.mubr.f32.mxu0 0.0
    %382 = vmatmul.mubr.f32.gmra.mrb[0].mxu0 %v118
    %v383 = vpop.f32.mrb[0].mxu0
    %v384 = vadd.f32 %v108, %v383
    %v385 = vpop.f32.mrb[0].mxu0
    %386 = vmatprep.mubr.f32.mxu0 0.0
    %387 = vmatmul.mubr.f32.gmra.mrb[0].mxu0 %v121
    %v388 = vpop.f32.mrb[0].mxu0
    %v389 = vadd.f32 %v108, %v388
    %v390 = vpop.f32.mrb[0].mxu0
    %391 = vmatprep.mubr.f32.mxu0 0.0
    %392 = vmatmul.mubr.f32.gmra.mrb[0].mxu0 %v124
    %v393 = vpop.f32.mrb[0].mxu0
    %v394 = vadd.f32 %v108, %v393
    %v395 = vpop.f32.mrb[0].mxu0
    %396 = vmatprep.mubr.f32.mxu0 0.0
    %397 = vmatmul.mubr.f32.gmra.mrb[0].mxu0 %v127
    %v398 = vpop.f32.mrb[0].mxu0
    %v399 = vadd.f32 %v108, %v398
    %v400 = vpop.f32.mrb[0].mxu0
    %401 = vmatprep.mubr.f32.mxu0 0.0
    %402 = vmatmul.mubr.f32.gmra.mrb[0].mxu0 %v130
    %v403 = vpop.f32.mrb[0].mxu0
    %v404 = vadd.f32 %v108, %v403
    %v405 = vpop.f32.mrb[0].mxu0
    %406 = vmatprep.mubr.f32.mxu0 0.0
    %407 = vmatmul.mubr.f32.gmra.mrb[0].mxu0 %v133
    %v408 = vpop.f32.mrb[0].mxu0
    %v409 = vadd.f32 %v108, %v408
    %v410 = vpop.f32.mrb[0].mxu0
    %411 = vmatprep.mubr.f32.mxu0 0.0
    %412 = vmatmul.mubr.f32.gmra.mrb[0].mxu0 %v136
    %v413 = vpop.f32.mrb[0].mxu0
    %v414 = vadd.f32 %v108, %v413
    %v415 = vpop.f32.mrb[0].mxu0
    %416 = vmatprep.mubr.f32.mxu0 0.0
    %417 = vmatmul.mubr.f32.gmra.mrb[0].mxu0 %v139
    %v418 = vpop.f32.mrb[0].mxu0
    %v419 = vadd.f32 %v108, %v418
    %v420 = vpop.f32.mrb[0].mxu0
    %421 = vmatprep.mubr.f32.mxu0 0.0
    %422 = vmatmul.mubr.f32.gmra.mrb[0].mxu0 %v142
    %v423 = vpop.f32.mrb[0].mxu0
    %v424 = vadd.f32 %v108, %v423
    %v425 = vpop.f32.mrb[0].mxu0
    %426 = vmatprep.mubr.f32.mxu0 0.0
    %427 = vmatmul.mubr.f32.gmra.mrb[0].mxu0 %v145
    %v428 = vpop.f32.mrb[0].mxu0
    %v429 = vadd.f32 %v108, %v428
    %v430 = vpop.f32.mrb[0].mxu0
    %431 = vmatprep.mubr.f32.mxu0 0.0
    %432 = vmatmul.mubr.f32.gmra.mrb[0].mxu0 %v148
    %v433 = vpop.f32.mrb[0].mxu0
    %v434 = vadd.f32 %v108, %v433
    %v435 = vpop.f32.mrb[0].mxu0
    %436 = vmatprep.mubr.f32.mxu0 0.0
    %437 = vmatmul.mubr.f32.gmra.mrb[0].mxu0 %v151
    %v438 = vpop.f32.mrb[0].mxu0
    %v439 = vadd.f32 %v108, %v438
    %v440 = vpop.f32.mrb[0].mxu0
    %441 = vmatprep.mubr.f32.mxu0 0.0
    %442 = vmatmul.mubr.f32.gmra.mrb[0].mxu0 %v154
    %v443 = vpop.f32.mrb[0].mxu0
    %v444 = vadd.f32 %v108, %v443
    %v445 = vpop.f32.mrb[0].mxu0
    %446 = vmatprep.mubr.f32.mxu0 0.0
    %447 = vmatmul.mubr.f32.gmra.mrb[0].mxu0 %v157
    %v448 = vpop.f32.mrb[0].mxu0
    %v449 = vadd.f32 %v108, %v448
    %v450 = vpop.f32.mrb[0].mxu0
    %451 = vmatprep.mubr.f32.mxu0 0.0
    %452 = vmatmul.mubr.f32.gmra.mrb[0].mxu0 %v160
    %v453 = vpop.f32.mrb[0].mxu0
    %v454 = vadd.f32 %v108, %v453
    %v455 = vpop.f32.mrb[0].mxu0
    %456 = vmatprep.mubr.f32.mxu0 0.0
    %457 = vmatmul.mubr.f32.gmra.mrb[0].mxu0 %v163
    %v458 = vpop.f32.mrb[0].mxu0
    %v459 = vadd.f32 %v108, %v458
    %v460 = vpop.f32.mrb[0].mxu0
    %461 = vmatprep.mubr.f32.mxu0 0.0
    %462 = vmatmul.mubr.f32.gmra.mrb[0].mxu0 %v166
    %v463 = vpop.f32.mrb[0].mxu0
    %v464 = vadd.f32 %v108, %v463
    %v465 = vpop.f32.mrb[0].mxu0
    %466 = vmatprep.mubr.f32.mxu0 0.0
    %467 = vmatmul.mubr.f32.gmra.mrb[0].mxu0 %v169
    %v468 = vpop.f32.mrb[0].mxu0
    %v469 = vadd.f32 %v108, %v468
    %v470 = vpop.f32.mrb[0].mxu0
    %471 = vmatprep.mubr.f32.mxu0 0.0
    %472 = vmatmul.mubr.f32.gmra.mrb[0].mxu0 %v172
    %v473 = vpop.f32.mrb[0].mxu0
    %v474 = vadd.f32 %v108, %v473
    %v475 = vpop.f32.mrb[0].mxu0
    %476 = vmatprep.mubr.f32.mxu0 0.0
    %477 = vmatmul.mubr.f32.gmra.mrb[0].mxu0 %v175
    %v478 = vpop.f32.mrb[0].mxu0
    %v479 = vadd.f32 %v108, %v478
    %v480 = vpop.f32.mrb[0].mxu0
    %481 = vmatprep.mubr.f32.mxu0 0.0
    %482 = vmatmul.mubr.f32.gmra.mrb[0].mxu0 %v178
    %v483 = vpop.f32.mrb[0].mxu0
    %v484 = vadd.f32 %v108, %v483
    %v485 = vpop.f32.mrb[0].mxu0
    %486 = vmatprep.mubr.f32.mxu0 0.0
    %487 = vmatmul.mubr.f32.gmra.mrb[0].mxu0 %v181
    %v488 = vpop.f32.mrb[0].mxu0
    %v489 = vadd.f32 %v108, %v488
    %v490 = vpop.f32.mrb[0].mxu0
    %491 = vmatprep.mubr.f32.mxu0 0.0
    %492 = vmatmul.mubr.f32.gmra.mrb[0].mxu0 %v184
    %v493 = vpop.f32.mrb[0].mxu0
    %v494 = vadd.f32 %v108, %v493
    %v495 = vpop.f32.mrb[0].mxu0
    %496 = vmatprep.mubr.f32.mxu0 0.0
    %497 = vmatmul.mubr.f32.gmra.mrb[0].mxu0 %v187
    %v498 = vpop.f32.mrb[0].mxu0
    %v499 = vadd.f32 %v108, %v498
    %v500 = vpop.f32.mrb[0].mxu0
    %501 = vmatprep.mubr.f32.mxu0 0.0
    %502 = vmatmul.mubr.f32.gmra.mrb[0].mxu0 %v190
    %v503 = vpop.f32.mrb[0].mxu0
    %v504 = vadd.f32 %v108, %v503
    %v505 = vpop.f32.mrb[0].mxu0
    %506 = vmatprep.mubr.f32.mxu0 0.0
    %507 = vmatmul.mubr.f32.gmra.mrb[0].mxu0 %v193
    %v508 = vpop.f32.mrb[0].mxu0
    %v509 = vadd.f32 %v108, %v508
    %v510 = vpop.f32.mrb[0].mxu0
    %511 = vmatprep.mubr.f32.mxu0 0.0
    %512 = vmatmul.mubr.f32.gmra.mrb[0].mxu0 %v196
    %v513 = vpop.f32.mrb[0].mxu0
    %v514 = vadd.f32 %v108, %v513
    %v515 = vpop.f32.mrb[0].mxu0
    %516 = vmatprep.mubr.f32.mxu0 0.0
    %517 = vmatmul.mubr.f32.gmra.mrb[0].mxu0 %v199
    %v518 = vpop.f32.mrb[0].mxu0
    %v519 = vadd.f32 %v108, %v518
    %v520 = vpop.f32.mrb[0].mxu0
    %521 = vmatprep.mubr.f32.mxu0 0.0
    %522 = vmatmul.mubr.f32.gmra.mrb[0].mxu0 %v202
    %v523 = vpop.f32.mrb[0].mxu0
    %v524 = vadd.f32 %v108, %v523
    %v525 = vpop.f32.mrb[0].mxu0
    %526 = vmatprep.mubr.f32.mxu0 0.0
    %527 = vmatmul.mubr.f32.gmra.mrb[0].mxu0 %v205
    %v528 = vpop.f32.mrb[0].mxu0
    %v529 = vadd.f32 %v108, %v528
    %v530 = vpop.f32.mrb[0].mxu0
    %531 = vmatprep.mubr.f32.mxu0 0.0
    %532 = vmatmul.mubr.f32.gmra.mrb[0].mxu0 %v208
    %v533 = vpop.f32.mrb[0].mxu0
    %v534 = vadd.f32 %v108, %v533
    %v535 = vpop.f32.mrb[0].mxu0
    %536 = vmatprep.mubr.f32.mxu0 0.0
    %537 = vmatmul.mubr.f32.gmra.mrb[0].mxu0 %v211
    %v538 = vpop.f32.mrb[0].mxu0
    %v539 = vadd.f32 %v108, %v538
    %v540 = vpop.f32.mrb[0].mxu0
    %541 = vmatprep.mubr.f32.mxu0 0.0
    %542 = vmatmul.mubr.f32.gmra.mrb[0].mxu0 %v214
    %v543 = vpop.f32.mrb[0].mxu0
    %v544 = vadd.f32 %v108, %v543
    %v545 = vpop.f32.mrb[0].mxu0
    %546 = vmatprep.mubr.f32.mxu0 0.0
    %547 = vmatmul.mubr.f32.gmra.mrb[0].mxu0 %v217
    %v548 = vpop.f32.mrb[0].mxu0
    %v549 = vadd.f32 %v108, %v548
    %v550 = vpop.f32.mrb[0].mxu0
    %551 = vmatprep.mubr.f32.mxu0 0.0
    %552 = vmatmul.mubr.f32.gmra.mrb[0].mxu0 %v220
    %v553 = vpop.f32.mrb[0].mxu0
    %v554 = vadd.f32 %v108, %v553
    %v555 = vpop.f32.mrb[0].mxu0
    %556 = vmatprep.mubr.f32.mxu0 0.0
    %557 = vmatmul.mubr.f32.gmra.mrb[0].mxu0 %v223
    %v558 = vpop.f32.mrb[0].mxu0
    %v559 = vadd.f32 %v108, %v558
    %v560 = vpop.f32.mrb[0].mxu0
    %561 = vmatprep.mubr.f32.mxu0 0.0
    %562 = vmatmul.mubr.f32.gmra.mrb[0].mxu0 %v226
    %v563 = vpop.f32.mrb[0].mxu0
    %v564 = vadd.f32 %v108, %v563
    %v565 = vpop.f32.mrb[0].mxu0
    %566 = vmatprep.mubr.f32.mxu0 0.0
    %567 = vmatmul.mubr.f32.gmra.mrb[0].mxu0 %v229
    %v568 = vpop.f32.mrb[0].mxu0
    %v569 = vadd.f32 %v108, %v568
    %v570 = vpop.f32.mrb[0].mxu0
    %571 = vmatprep.mubr.f32.mxu0 0.0
    %572 = vmatmul.mubr.f32.gmra.mrb[0].mxu0 %v232
    %v573 = vpop.f32.mrb[0].mxu0
    %v574 = vadd.f32 %v108, %v573
    %v575 = vpop.f32.mrb[0].mxu0
    %576 = vmatprep.mubr.f32.mxu0 0.0
    %577 = vmatmul.mubr.f32.gmra.mrb[0].mxu0 %v235
    %v578 = vpop.f32.mrb[0].mxu0
    %v579 = vadd.f32 %v108, %v578
    %v580 = vpop.f32.mrb[0].mxu0
    %581 = vmatprep.mubr.f32.mxu0 0.0
    %582 = vmatmul.mubr.f32.gmra.mrb[0].mxu0 %v238
    %v583 = vpop.f32.mrb[0].mxu0
    %v584 = vadd.f32 %v108, %v583
    %v585 = vpop.f32.mrb[0].mxu0
    %586 = vmatprep.mubr.f32.mxu0 0.0
    %587 = vmatmul.mubr.f32.gmra.mrb[0].mxu0 %v241
    %v588 = vpop.f32.mrb[0].mxu0
    %v589 = vadd.f32 %v108, %v588
    %v590 = vpop.f32.mrb[0].mxu0
    %591 = vmatprep.mubr.f32.mxu0 0.0
    %592 = vmatmul.mubr.f32.gmra.mrb[0].mxu0 %v244
    %v593 = vpop.f32.mrb[0].mxu0
    %v594 = vadd.f32 %v108, %v593
    %v595 = vpop.f32.mrb[0].mxu0
    %596 = vmatprep.mubr.f32.mxu0 0.0
    %597 = vmatmul.mubr.f32.gmra.mrb[0].mxu0 %v247
    %v598 = vpop.f32.mrb[0].mxu0
    %v599 = vadd.f32 %v108, %v598
    %v600 = vpop.f32.mrb[0].mxu0
    %601 = vmatprep.mubr.f32.mxu0 0.0
    %602 = vmatmul.mubr.f32.gmra.mrb[0].mxu0 %v250
    %v603 = vpop.f32.mrb[0].mxu0
    %v604 = vadd.f32 %v108, %v603
    %v605 = vpop.f32.mrb[0].mxu0
    %606 = vmatprep.mubr.f32.mxu0 0.0
    %607 = vmatmul.mubr.f32.gmra.mrb[0].mxu0 %v253
    %v608 = vpop.f32.mrb[0].mxu0
    %v609 = vadd.f32 %v108, %v608
    %v610 = vpop.f32.mrb[0].mxu0
    %611 = vmatprep.mubr.f32.mxu0 0.0
    %612 = vmatmul.mubr.f32.gmra.mrb[0].mxu0 %v256
    %v613 = vpop.f32.mrb[0].mxu0
    %v614 = vadd.f32 %v108, %v613
    %v615 = vpop.f32.mrb[0].mxu0
    %616 = vmatprep.mubr.f32.mxu0 0.0
    %617 = vmatmul.mubr.f32.gmra.mrb[0].mxu0 %v259
    %v618 = vpop.f32.mrb[0].mxu0
    %v619 = vadd.f32 %v108, %v618
    %v620 = vpop.f32.mrb[0].mxu0
    %621 = vmatprep.mubr.f32.mxu0 0.0
    %622 = vmatmul.mubr.f32.gmra.mrb[0].mxu0 %v262
    %v623 = vpop.f32.mrb[0].mxu0
    %v624 = vadd.f32 %v108, %v623
    %v625 = vpop.f32.mrb[0].mxu0
    %626 = vmatprep.mubr.f32.mxu0 0.0
    %627 = vmatmul.mubr.f32.gmra.mrb[0].mxu0 %v265
    %v628 = vpop.f32.mrb[0].mxu0
    %v629 = vadd.f32 %v108, %v628
    %v630 = vpop.f32.mrb[0].mxu0
    %631 = vmatprep.mubr.f32.mxu0 0.0
    %632 = vmatmul.mubr.f32.gmra.mrb[0].mxu0 %v268
    %v633 = vpop.f32.mrb[0].mxu0
    %v634 = vadd.f32 %v108, %v633
    %v635 = vpop.f32.mrb[0].mxu0
    %636 = vmatprep.mubr.f32.mxu0 0.0
    %637 = vmatmul.mubr.f32.gmra.mrb[0].mxu0 %v271
    %v638 = vpop.f32.mrb[0].mxu0
    %v639 = vadd.f32 %v108, %v638
    %v640 = vpop.f32.mrb[0].mxu0
    %641 = vmatprep.mubr.f32.mxu0 0.0
    %642 = vmatmul.mubr.f32.gmra.mrb[0].mxu0 %v274
    %v643 = vpop.f32.mrb[0].mxu0
    %v644 = vadd.f32 %v108, %v643
    %v645 = vpop.f32.mrb[0].mxu0
    %646 = vmatprep.mubr.f32.mxu0 0.0
    %647 = vmatmul.mubr.f32.gmra.mrb[0].mxu0 %v277
    %v648 = vpop.f32.mrb[0].mxu0
    %v649 = vadd.f32 %v108, %v648
    %v650 = vpop.f32.mrb[0].mxu0
    %651 = vmatprep.mubr.f32.mxu0 0.0
    %652 = vmatmul.mubr.f32.gmra.mrb[0].mxu0 %v280
    %v653 = vpop.f32.mrb[0].mxu0
    %v654 = vadd.f32 %v108, %v653
    %v655 = vpop.f32.mrb[0].mxu0
    %656 = vmatprep.mubr.f32.mxu0 0.0
    %657 = vmatmul.mubr.f32.gmra.mrb[0].mxu0 %v283
    %v658 = vpop.f32.mrb[0].mxu0
    %v659 = vadd.f32 %v108, %v658
    %v660 = vpop.f32.mrb[0].mxu0
    %661 = vmatprep.mubr.f32.mxu0 0.0
    %662 = vmatmul.mubr.f32.gmra.mrb[0].mxu0 %v286
    %v663 = vpop.f32.mrb[0].mxu0
    %v664 = vadd.f32 %v108, %v663
    %v665 = vpop.f32.mrb[0].mxu0
    %666 = vmatprep.mubr.f32.mxu0 0.0
    %667 = vmatmul.mubr.f32.gmra.mrb[0].mxu0 %v289
    %v668 = vpop.f32.mrb[0].mxu0
    %v669 = vadd.f32 %v108, %v668
    %v670 = vpop.f32.mrb[0].mxu0
    %671 = vmatprep.mubr.f32.mxu0 0.0
    %672 = vmatmul.mubr.f32.gmra.mrb[0].mxu0 %v292
    %v673 = vpop.f32.mrb[0].mxu0
    %v674 = vadd.f32 %v108, %v673
    %v675 = vpop.f32.mrb[0].mxu0
    %676 = vmatprep.mubr.f32.mxu0 0.0
    %677 = vmatmul.mubr.f32.gmra.mrb[0].mxu0 %v295
    %v678 = vpop.f32.mrb[0].mxu0
    %v679 = vadd.f32 %v108, %v678
    %v680 = vpop.f32.mrb[0].mxu0
    %681 = vmatprep.mubr.f32.mxu0 0.0
    %682 = vmatmul.mubr.f32.gmra.mrb[0].mxu0 %v298
    %v683 = vpop.f32.mrb[0].mxu0
    %v684 = vadd.f32 %v108, %v683
    %v685 = vpop.f32.mrb[0].mxu0
    %686 = vmatprep.mubr.f32.mxu0 0.0
    %687 = vmatmul.mubr.f32.gmra.mrb[0].mxu0 %v301
    %v688 = vpop.f32.mrb[0].mxu0
    %v689 = vadd.f32 %v108, %v688
    %v690 = vpop.f32.mrb[0].mxu0
    %691 = vdwg.mxu0
    %v692 = vmax.f32 %v374, 0.0
    %v693 = vmax.f32 %v379, 0.0
    %v694 = vmax.f32 %v384, 0.0
    %v695 = vmax.f32 %v389, 0.0
    %v696 = vmax.f32 %v394, 0.0
    %v697 = vmax.f32 %v399, 0.0
    %v698 = vmax.f32 %v404, 0.0
    %v699 = vmax.f32 %v409, 0.0
    %v700 = vmax.f32 %v414, 0.0
    %v701 = vmax.f32 %v419, 0.0
    %v702 = vmax.f32 %v424, 0.0
    %v703 = vmax.f32 %v429, 0.0
    %v704 = vmax.f32 %v434, 0.0
    %v705 = vmax.f32 %v439, 0.0
    %v706 = vmax.f32 %v444, 0.0
    %v707 = vmax.f32 %v449, 0.0
    %v708 = vmax.f32 %v454, 0.0
    %v709 = vmax.f32 %v459, 0.0
    %v710 = vmax.f32 %v464, 0.0
    %v711 = vmax.f32 %v469, 0.0
    %v712 = vmax.f32 %v474, 0.0
    %v713 = vmax.f32 %v479, 0.0
    %v714 = vmax.f32 %v484, 0.0
    %v715 = vmax.f32 %v489, 0.0
    %v716 = vmax.f32 %v494, 0.0
    %v717 = vmax.f32 %v499, 0.0
    %v718 = vmax.f32 %v504, 0.0
    %v719 = vmax.f32 %v509, 0.0
    %v720 = vmax.f32 %v514, 0.0
    %v721 = vmax.f32 %v519, 0.0
    %v722 = vmax.f32 %v524, 0.0
    %v723 = vmax.f32 %v529, 0.0
    %v724 = vmax.f32 %v534, 0.0
    %v725 = vmax.f32 %v539, 0.0
    %v726 = vmax.f32 %v544, 0.0
    %v727 = vmax.f32 %v549, 0.0
    %v728 = vmax.f32 %v554, 0.0
    %v729 = vmax.f32 %v559, 0.0
    %v730 = vmax.f32 %v564, 0.0
    %v731 = vmax.f32 %v569, 0.0
    %v732 = vmax.f32 %v574, 0.0
    %v733 = vmax.f32 %v579, 0.0
    %v734 = vmax.f32 %v584, 0.0
    %v735 = vmax.f32 %v589, 0.0
    %v736 = vmax.f32 %v594, 0.0
    %v737 = vmax.f32 %v599, 0.0
    %v738 = vmax.f32 %v604, 0.0
    %v739 = vmax.f32 %v609, 0.0
    %v740 = vmax.f32 %v614, 0.0
    %v741 = vmax.f32 %v619, 0.0
    %v742 = vmax.f32 %v624, 0.0
    %v743 = vmax.f32 %v629, 0.0
    %v744 = vmax.f32 %v634, 0.0
    %v745 = vmax.f32 %v639, 0.0
    %v746 = vmax.f32 %v644, 0.0
    %v747 = vmax.f32 %v649, 0.0
    %v748 = vmax.f32 %v654, 0.0
    %v749 = vmax.f32 %v659, 0.0
    %v750 = vmax.f32 %v664, 0.0
    %v751 = vmax.f32 %v669, 0.0
    %v752 = vmax.f32 %v674, 0.0
    %v753 = vmax.f32 %v679, 0.0
    %v754 = vmax.f32 %v684, 0.0
    %v755 = vmax.f32 %v689, 0.0
    %vm756 = vcmask 261120
    %v757 = vsel %vm756, %v692, 0.0
    %v758 = vsel %vm756, %v693, 0.0
    %v759 = vadd.f32 %v757, %v758
    %v760 = vsel %vm756, %v694, 0.0
    %v761 = vadd.f32 %v759, %v760
    %v762 = vsel %vm756, %v695, 0.0
    %v763 = vadd.f32 %v761, %v762
    %v764 = vsel %vm756, %v696, 0.0
    %v765 = vadd.f32 %v763, %v764
    %v766 = vsel %vm756, %v697, 0.0
    %v767 = vadd.f32 %v765, %v766
    %v768 = vsel %vm756, %v698, 0.0
    %v769 = vadd.f32 %v767, %v768
    %v770 = vsel %vm756, %v699, 0.0
    %v771 = vadd.f32 %v769, %v770
    %v772 = vsel %vm756, %v700, 0.0
    %v773 = vadd.f32 %v771, %v772
    %v774 = vsel %vm756, %v701, 0.0
    %v775 = vadd.f32 %v773, %v774
    %v776 = vsel %vm756, %v702, 0.0
    %v777 = vadd.f32 %v775, %v776
    %v778 = vsel %vm756, %v703, 0.0
    %v779 = vadd.f32 %v777, %v778
    %v780 = vsel %vm756, %v704, 0.0
    %v781 = vadd.f32 %v779, %v780
    %v782 = vsel %vm756, %v705, 0.0
    %v783 = vadd.f32 %v781, %v782
    %v784 = vsel %vm756, %v706, 0.0
    %v785 = vadd.f32 %v783, %v784
    %v786 = vsel %vm756, %v707, 0.0
    %v787 = vadd.f32 %v785, %v786
    %v788 = vsel %vm756, %v708, 0.0
    %v789 = vadd.f32 %v787, %v788
    %v790 = vsel %vm756, %v709, 0.0
    %v791 = vadd.f32 %v789, %v790
    %v792 = vsel %vm756, %v710, 0.0
    %v793 = vadd.f32 %v791, %v792
    %v794 = vsel %vm756, %v711, 0.0
    %v795 = vadd.f32 %v793, %v794
    %v796 = vsel %vm756, %v712, 0.0
    %v797 = vadd.f32 %v795, %v796
    %v798 = vsel %vm756, %v713, 0.0
    %v799 = vadd.f32 %v797, %v798
    %v800 = vsel %vm756, %v714, 0.0
    %v801 = vadd.f32 %v799, %v800
    %v802 = vsel %vm756, %v715, 0.0
    %v803 = vadd.f32 %v801, %v802
    %v804 = vsel %vm756, %v716, 0.0
    %v805 = vadd.f32 %v803, %v804
    %v806 = vsel %vm756, %v717, 0.0
    %v807 = vadd.f32 %v805, %v806
    %v808 = vsel %vm756, %v718, 0.0
    %v809 = vadd.f32 %v807, %v808
    %v810 = vsel %vm756, %v719, 0.0
    %v811 = vadd.f32 %v809, %v810
    %v812 = vsel %vm756, %v720, 0.0
    %v813 = vadd.f32 %v811, %v812
    %v814 = vsel %vm756, %v721, 0.0
    %v815 = vadd.f32 %v813, %v814
    %v816 = vsel %vm756, %v722, 0.0
    %v817 = vadd.f32 %v815, %v816
    %v818 = vsel %vm756, %v723, 0.0
    %v819 = vadd.f32 %v817, %v818
    %v820 = vrot.slane %v819, 4
    %v821 = vadd.f32 %v819, %v820
    %v822 = vrot.slane %v821, 2
    %v823 = vadd.f32 %v821, %v822
    %v824 = vrot.slane %v823, 1
    %v825 = vadd.f32 %v823, %v824
    %v826 = vsel %vm756, %v724, 0.0
    %v827 = vsel %vm756, %v725, 0.0
    %v828 = vadd.f32 %v826, %v827
    %v829 = vsel %vm756, %v726, 0.0
    %v830 = vadd.f32 %v828, %v829
    %v831 = vsel %vm756, %v727, 0.0
    %v832 = vadd.f32 %v830, %v831
    %v833 = vsel %vm756, %v728, 0.0
    %v834 = vadd.f32 %v832, %v833
    %v835 = vsel %vm756, %v729, 0.0
    %v836 = vadd.f32 %v834, %v835
    %v837 = vsel %vm756, %v730, 0.0
    %v838 = vadd.f32 %v836, %v837
    %v839 = vsel %vm756, %v731, 0.0
    %v840 = vadd.f32 %v838, %v839
    %v841 = vsel %vm756, %v732, 0.0
    %v842 = vadd.f32 %v840, %v841
    %v843 = vsel %vm756, %v733, 0.0
    %v844 = vadd.f32 %v842, %v843
    %v845 = vsel %vm756, %v734, 0.0
    %v846 = vadd.f32 %v844, %v845
    %v847 = vsel %vm756, %v735, 0.0
    %v848 = vadd.f32 %v846, %v847
    %v849 = vsel %vm756, %v736, 0.0
    %v850 = vadd.f32 %v848, %v849
    %v851 = vsel %vm756, %v737, 0.0
    %v852 = vadd.f32 %v850, %v851
    %v853 = vsel %vm756, %v738, 0.0
    %v854 = vadd.f32 %v852, %v853
    %v855 = vsel %vm756, %v739, 0.0
    %v856 = vadd.f32 %v854, %v855
    %v857 = vsel %vm756, %v740, 0.0
    %v858 = vadd.f32 %v856, %v857
    %v859 = vsel %vm756, %v741, 0.0
    %v860 = vadd.f32 %v858, %v859
    %v861 = vsel %vm756, %v742, 0.0
    %v862 = vadd.f32 %v860, %v861
    %v863 = vsel %vm756, %v743, 0.0
    %v864 = vadd.f32 %v862, %v863
    %v865 = vsel %vm756, %v744, 0.0
    %v866 = vadd.f32 %v864, %v865
    %v867 = vsel %vm756, %v745, 0.0
    %v868 = vadd.f32 %v866, %v867
    %v869 = vsel %vm756, %v746, 0.0
    %v870 = vadd.f32 %v868, %v869
    %v871 = vsel %vm756, %v747, 0.0
    %v872 = vadd.f32 %v870, %v871
    %v873 = vsel %vm756, %v748, 0.0
    %v874 = vadd.f32 %v872, %v873
    %v875 = vsel %vm756, %v749, 0.0
    %v876 = vadd.f32 %v874, %v875
    %v877 = vsel %vm756, %v750, 0.0
    %v878 = vadd.f32 %v876, %v877
    %v879 = vsel %vm756, %v751, 0.0
    %v880 = vadd.f32 %v878, %v879
    %v881 = vsel %vm756, %v752, 0.0
    %v882 = vadd.f32 %v880, %v881
    %v883 = vsel %vm756, %v753, 0.0
    %v884 = vadd.f32 %v882, %v883
    %v885 = vsel %vm756, %v754, 0.0
    %v886 = vadd.f32 %v884, %v885
    %v887 = vsel %vm756, %v755, 0.0
    %v888 = vadd.f32 %v886, %v887
    %v889 = vrot.slane %v888, 4
    %v890 = vadd.f32 %v888, %v889
    %v891 = vrot.slane %v890, 2
    %v892 = vadd.f32 %v890, %v891
    %v893 = vrot.slane %v892, 1
    %v894 = vadd.f32 %v892, %v893
    %v895 = vrcp.pop 256.0
    %v896 = vmul.f32 %v825, %v895
    %v897 = vmul.f32 %v894, %v895
    %vm900 = vcmask 1041409
    %v901 = vsel %vm900, %v897, %v896
    %vm903 = vcmask 254976
    %904 = vst.msk [vmem:[#allocation4] sm:$0x3] %vm903, %v901
    %v905 = vld [vmem:[%s6] sm:$0x1]
    %v906 = vadd.f32 %v905, 1e-05
    %v907 = vrsqrt.pop %v906
    %v908 = vld [vmem:[%s5] sm:$0x1]
    %v910 = vlaneseq
    %v911 = vshrl.u32 %v910, 7
    %v912 = vsub.s32 0, %v911
    %v913 = vrot.slane %v908, %v912
    %v915 = vsub.f32 %v896, %v913
    %v916 = vsub.f32 %v897, %v913
    %v917 = vld [vmem:[%s3] sm:$0x1]
    %v918 = vmul.f32 %v907, %v917
    %v920 = vlaneseq
    %v921 = vshrl.u32 %v920, 7
    %v922 = vsub.s32 0, %v921
    %v923 = vrot.slane %v918, %v922
    %v925 = vmul.f32 %v915, %v923
    %v926 = vmul.f32 %v916, %v923
    %v927 = vld [vmem:[%s4] sm:$0x1]
    %v929 = vlaneseq
    %v930 = vshrl.u32 %v929, 7
    %v931 = vsub.s32 0, %v930
    %v932 = vrot.slane %v927, %v931
    %v934 = vadd.f32 %v925, %v932
    %v935 = vadd.f32 %v926, %v932
    %v938 = vrot.slane %v935, 7
    %v939 = vsel %vm900, %v938, %v934
    %941 = vst.msk [vmem:[#allocation6] sm:$0x3] %vm903, %v939
    %v942 = vld [vmem:[%s7] sm:$0xff]
    %v943 = vld [vmem:[%s7 + $0x8] sm:$0xff]
    %v944 = vld [vmem:[%s7 + $0x10] sm:$0xff]
    %v945 = vld [vmem:[%s7 + $0x18] sm:$0xff]
    %v946 = vsel %vm756, %v939, 0
    %948 = vmatprep.subr.mxu0 0.0
    %949 = vmatpush1.msra.mxu0 %v942
    %950 = vmatprep.subr.mxu0 0.0
    %951 = vmatpush1.msra.mxu0 %v943
    %952 = vmatprep.subr.mxu0 0.0
    %953 = vmatpush1.msra.mxu0 %v944
    %954 = vmatprep.subr.mxu0 0.0
    %955 = vmatpush1.msra.mxu0 %v945
    %956 = vmatprep.subr.mxu0 0.0
    %957 = vmatpush1.msra.mxu0 0.0
    %958 = vmatprep.subr.mxu0 0.0
    %959 = vmatpush1.msra.mxu0 0.0
    %960 = vmatprep.subr.mxu0 0.0
    %961 = vmatpush1.msra.mxu0 0.0
    %962 = vmatprep.subr.mxu0 0.0
    %963 = vmatpush1.msra.mxu0 0.0
    %964 = vmatprep.subr.mxu0 0.0
    %965 = vmatpush1.msra.mxu0 0.0
    %966 = vmatprep.subr.mxu0 0.0
    %967 = vmatpush1.msra.mxu0 0.0
    %968 = vmatprep.subr.mxu0 0.0
    %969 = vmatpush1.msra.mxu0 0.0
    %970 = vmatprep.subr.mxu0 0.0
    %971 = vmatpush1.msra.mxu0 0.0
    %972 = vmatprep.subr.mxu0 0.0
    %973 = vmatpush1.msra.mxu0 0.0
    %974 = vmatprep.subr.mxu0 0.0
    %975 = vmatpush1.msra.mxu0 0.0
    %976 = vmatprep.subr.mxu0 0.0
    %977 = vmatpush1.msra.mxu0 0.0
    %978 = vmatprep.subr.mxu0 0.0
    %979 = vmatpush1.msra.mxu0 0.0
    %980 = vmatprep.subr.mxu0 0.0
    %981 = vmatpush1.msra.mxu0 0.0
    %982 = vmatprep.subr.mxu0 0.0
    %983 = vmatpush1.msra.mxu0 0.0
    %984 = vmatprep.subr.mxu0 0.0
    %985 = vmatpush1.msra.mxu0 0.0
    %986 = vmatprep.subr.mxu0 0.0
    %987 = vmatpush1.msra.mxu0 0.0
    %988 = vmatprep.subr.mxu0 0.0
    %989 = vmatpush1.msra.mxu0 0.0
    %990 = vmatprep.subr.mxu0 0.0
    %991 = vmatpush1.msra.mxu0 0.0
    %992 = vmatprep.subr.mxu0 0.0
    %993 = vmatpush1.msra.mxu0 0.0
    %994 = vmatprep.subr.mxu0 0.0
    %995 = vmatpush1.msra.mxu0 0.0
    %996 = vmatprep.subr.mxu0 0.0
    %997 = vmatpush1.msra.mxu0 0.0
    %998 = vmatprep.subr.mxu0 0.0
    %999 = vmatpush1.msra.mxu0 0.0
    %1000 = vmatprep.subr.mxu0 0.0
    %1001 = vmatpush1.msra.mxu0 0.0
    %1002 = vmatprep.subr.mxu0 0.0
    %1003 = vmatpush1.msra.mxu0 0.0
    %1004 = vmatprep.subr.mxu0 0.0
    %1005 = vmatpush1.msra.mxu0 0.0
    %1006 = vmatprep.subr.mxu0 0.0
    %1007 = vmatpush1.msra.mxu0 0.0
    %1008 = vmatprep.subr.mxu0 0.0
    %1009 = vmatpush1.msra.mxu0 0.0
    %1010 = vmatprep.subr.mxu0 0.0
    %1011 = vmatpush1.msra.mxu0 0.0
    %1012 = vmatprep.mubr.f32.mxu0 0.0
    %1013 = vmatmul.mubr.f32.gmra.mrb[0].mxu0 %v946
    %v1014 = vpop.f32.mrb[0].mxu0
    %v1015 = vadd.f32 0.0, %v1014
    %v1016 = vpop.f32.mrb[0].mxu0
    %1017 = vdwg.mxu0
    %vm1018 = vcmask 74752
    %1019 = vst.msk [vmem:[#allocation2] sm:$0x3] %vm1018, %v1015
    // Predicated region
    $region34: #{baseline_forward.1} parent=1 // pred_check
      _
    $region35: #{baseline_forward.1} parent=1 // pred_check_branch
      %1021 = sbr.rel (0) target = $region37
    $region36: #{baseline_forward.1} parent=1 // pred_region
      %s1023 = ssub.s32 32, 32
      %1024 = vsyncadd [#allocation3], %s1023
      %s1026 = sshll.u32 [#allocation2], 4
      %s1027 = int_to_ptr.vmem [resolvable:$true] %s1026
      %1029 = dma.vmem_to_hbm [thread:$0]  %s1027, 32, %s8, [#allocation3]
    $region37: #{baseline_forward.1} parent=1 // pred_fallthru
      _
    // Predicated region
    $region38: #{baseline_forward.1} parent=1 // pred_check
      _
    $region39: #{baseline_forward.1} parent=1 // pred_check_branch
      %1031 = sbr.rel (0) target = $region41
    $region40: #{baseline_forward.1} parent=1 // pred_region
      %s1033 = ssub.s32 32, 32
      %1034 = vsyncadd [#allocation5], %s1033
      %s1036 = sshll.u32 [#allocation4], 4
      %s1037 = int_to_ptr.vmem [resolvable:$true] %s1036
      %1039 = dma.vmem_to_hbm [thread:$0]  %s1037, 32, %s9, [#allocation5]
    $region41: #{baseline_forward.1} parent=1 // pred_fallthru
      _
    // Predicated region
    $region42: #{baseline_forward.1} parent=1 // pred_check
      _
    $region43: #{baseline_forward.1} parent=1 // pred_check_branch
      %1041 = sbr.rel (0) target = $region45
    $region44: #{baseline_forward.1} parent=1 // pred_region
      %s1043 = ssub.s32 32, 32
      %1044 = vsyncadd [#allocation5], %s1043
      %s1046 = sshll.u32 [#allocation6], 4
      %s1047 = int_to_ptr.vmem [resolvable:$true] %s1046
      %1049 = dma.vmem_to_hbm [thread:$0]  %s1047, 32, %s10, [#allocation5]
    $region45: #{baseline_forward.1} parent=1 // pred_fallthru
      _
    // Predicated region
    $region46: #{baseline_forward.1} parent=1 // pred_check
      _
    $region47: #{baseline_forward.1} parent=1 // pred_check_branch
      %1051 = sbr.rel (0) target = $region49
    $region48: #{baseline_forward.1} parent=1 // pred_region
      %1052 = dma.done [#allocation3], 32
    $region49: #{baseline_forward.1} parent=1 // pred_fallthru
      _
    // Predicated region
    $region50: #{baseline_forward.1} parent=1 // pred_check
      _
    $region51: #{baseline_forward.1} parent=1 // pred_check_branch
      %1054 = sbr.rel (0) target = $region53
    $region52: #{baseline_forward.1} parent=1 // pred_region
      %1055 = dma.done [#allocation5], 32
    $region53: #{baseline_forward.1} parent=1 // pred_fallthru
      _
    // Predicated region
    $region54: #{baseline_forward.1} parent=1 // pred_check
      _
    $region55: #{baseline_forward.1} parent=1 // pred_check_branch
      %1057 = sbr.rel (0) target = $region57
    $region56: #{baseline_forward.1} parent=1 // pred_region
      %1058 = dma.done [#allocation5], 32
    $region57: #{baseline_forward.1} parent=1 // pred_fallthru
      _
    %1059 = vsyncpa [#allocation3], 1
    %1060 = vsyncpa [#allocation5], 1

</llo_original>
